<compile_context>
chip_gen: v7x
topology: tpu7x:2x2x1
jax: 0.10.0
libtpu: 0.0.40
codegen_flags: <defaults>
</compile_context>

<pallas_src>
import functools
import math

import jax
import jax.numpy as jnp
from jax.experimental import pallas as pl
from jax.experimental.pallas import tpu as pltpu


def _self_attention_kernel(q_ref, k_ref, v_ref, maskb_ref,
                           wq_ref, wk_ref, wv_ref, wo_ref, bias_ref,
                           out_ref, attn_ref, *, heads):
    # Per grid step (one batch element): q/k/v blocks (S, E) bf16, mask bias (S, S) f32,
    # weights (E, E) bf16, packed biases (4, E) f32.
    s, e = q_ref.shape
    d = e // heads
    f32 = jnp.float32
    bf16 = jnp.bfloat16

    bq = bias_ref[0:1, :]   # already scaled by 1/sqrt(E) in the wrapper
    bk = bias_ref[1:2, :]
    bv = bias_ref[2:3, :]
    bo = bias_ref[3:4, :]

    # Input projections: bf16 operands on the MXU, f32 accumulation, f32 bias add.
    # (The 1/sqrt(E) scale is folded into wq/bq wrapper-side.)
    q_p = jnp.dot(q_ref[...], wq_ref[...], preferred_element_type=f32) + bq
    k_p = jnp.dot(k_ref[...], wk_ref[...], preferred_element_type=f32) + bk
    v_p = jnp.dot(v_ref[...], wv_ref[...], preferred_element_type=f32) + bv

    mask_bias = maskb_ref[...]          # precomputed f32 additive mask bias (S, S)

    acc = None
    for h in range(heads):              # static unroll; heads is small
        lo, hi = h * d, (h + 1) * d
        if heads == 1:
            qh, kh, vh = q_p, k_p, v_p
            wo_h = wo_ref[...]
        else:
            qh = q_p[:, lo:hi]
            kh = k_p[:, lo:hi]
            vh = v_p[:, lo:hi]
            wo_h = wo_ref[lo:hi, :]     # slice the resident weight, not later activations

        # energy = Q @ K^T: dot_general contracting the last dims — no XLU transpose.
        energy = jnp.einsum('qd,kd->qk', qh.astype(bf16), kh.astype(bf16),
                            preferred_element_type=f32)
        energy = energy + mask_bias     # f32 add (keeps -1e20 exact)

        # Numerically stable softmax in f32 with an EXACT normalization
        # (attention is a public output of this module).
        m = jnp.max(energy, axis=-1, keepdims=True)
        p = jnp.exp(energy - m)
        l = jnp.sum(p, axis=-1, keepdims=True)
        attn = p * (jnp.float32(1.0) / l)
        attn_ref[h] = attn

        ctx = jnp.einsum('qk,kd->qd', attn.astype(bf16), vh.astype(bf16),
                         preferred_element_type=f32)
        # Fuse the head-concat into the output projection.
        part = jnp.dot(ctx.astype(bf16), wo_h, preferred_element_type=f32)
        acc = part if acc is None else acc + part

    out_ref[...] = (acc + bo).astype(out_ref.dtype)


def self_attention(q, k, v, mask, params, heads=1):
    """q, k, v: (N, S, E) float32; mask: (S, S) int32. Returns (out, attention)."""
    n, s, e = q.shape
    wq, bq, wk, bk, wv, bv, wo, bo = params

    # Wrapper-side (free XLA) prep:
    #   * fold 1/sqrt(embed_size) into the query projection (matches the reference, which
    #     scales by sqrt(embed_size), not sqrt(head_dim));
    #   * additive f32 mask bias instead of an in-kernel int compare+select;
    #   * bf16 weights / inputs for the MXU (biases stay f32).
    scale = 1.0 / math.sqrt(float(e))
    wq_s, bq_s = wq * scale, bq * scale
    mask_bias = jnp.where(mask == 0, jnp.float32(-1e20), jnp.float32(0.0))
    biases = jnp.concatenate([bq_s, bk, bv, bo], axis=0).astype(jnp.float32)  # (4, E)
    to_bf16 = lambda a: a.astype(jnp.bfloat16)

    kernel = functools.partial(_self_attention_kernel, heads=heads)

    batch3d = lambda i: (i, 0, 0)
    full2d = lambda i: (0, 0)

    out, attn = pl.pallas_call(
        kernel,
        out_shape=(
            jax.ShapeDtypeStruct((n, s, e), jnp.float32),
            jax.ShapeDtypeStruct((n, heads, s, s), jnp.float32),
        ),
        grid=(n,),
        in_specs=[
            pl.BlockSpec((None, s, e), batch3d),   # q   (batch dim squeezed)
            pl.BlockSpec((None, s, e), batch3d),   # k
            pl.BlockSpec((None, s, e), batch3d),   # v
            pl.BlockSpec((s, s), full2d),          # mask bias (f32)
            pl.BlockSpec((e, e), full2d),          # Wq (scaled, bf16)
            pl.BlockSpec((e, e), full2d),          # Wk (bf16)
            pl.BlockSpec((e, e), full2d),          # Wv (bf16)
            pl.BlockSpec((e, e), full2d),          # Wo (bf16)
            pl.BlockSpec((4, e), full2d),          # packed f32 biases
        ],
        out_specs=(
            pl.BlockSpec((None, s, e), batch3d),
            pl.BlockSpec((None, heads, s, s), lambda i: (i, 0, 0, 0)),
        ),
        compiler_params=pltpu.CompilerParams(
            dimension_semantics=("parallel",)),    # batch steps shard across v7x's 2 TCs
    )(to_bf16(q), to_bf16(k), to_bf16(v), mask_bias,
      to_bf16(wq_s), to_bf16(wk), to_bf16(wv), to_bf16(wo), biases)
    return out, attn


def _reference(q, k, v, mask, params, heads):
    """Pure-JAX f32 reference mirroring the PyTorch forward."""
    wq, bq, wk, bk, wv, bv, wo, bo = params
    n, s, e = q.shape
    d = e // heads
    queries = (q @ wq + bq).reshape(n, s, heads, d)
    keys = (k @ wk + bk).reshape(n, s, heads, d)
    values = (v @ wv + bv).reshape(n, s, heads, d)
    energy = jnp.einsum('nqhd,nkhd->nhqk', queries, keys)
    energy = jnp.where(mask[None, None] == 0, -1e20, energy)
    attn = jax.nn.softmax(energy / math.sqrt(e), axis=3)
    out = jnp.einsum('nhql,nlhd->nqhd', attn, values).reshape(n, s, e)
    return out @ wo + bo, attn


if __name__ == "__main__":
    N, S, E = 2, 8, 32  # batch, sequence length, embed_size

    key = jax.random.PRNGKey(0)
    ks = jax.random.split(key, 12)

    q = jax.random.normal(ks[0], (N, S, E), jnp.float32)
    k = jax.random.normal(ks[1], (N, S, E), jnp.float32)
    v = jax.random.normal(ks[2], (N, S, E), jnp.float32)

    # Synthetic dependency-parse style mask: diagonal always 1, random 0/1 elsewhere
    # (stands in for from_parser2masking_temp, which needs spaCy).
    mask = jax.random.bernoulli(ks[3], 0.4, (S, S)).astype(jnp.int32)
    mask = jnp.maximum(mask, jnp.eye(S, dtype=jnp.int32))

    def lin_init(kw, kb):
        bound = 1.0 / math.sqrt(E)
        w = jax.random.uniform(kw, (E, E), jnp.float32, -bound, bound)
        b = jax.random.uniform(kb, (1, E), jnp.float32, -bound, bound)
        return w, b

    wq, bq = lin_init(ks[4], ks[5])
    wk, bk = lin_init(ks[6], ks[7])
    wv, bv = lin_init(ks[8], ks[9])
    wo, bo = lin_init(ks[10], ks[11])
    params = (wq, bq, wk, bk, wv, bv, wo, bo)

    ok = True
    for heads in (1, 2):
        out, attn = self_attention(q, k, v, mask, params, heads=heads)
        jax.block_until_ready((out, attn))
        out_ref, attn_ref = _reference(q, k, v, mask, params, heads)
        # bf16 MXU operands (f32 accumulation) in the kernel vs. an all-f32 reference
        # -> relaxed tolerance; softmax normalization itself is exact.
        ok &= bool(jnp.allclose(out, out_ref, atol=2e-2, rtol=2e-2))
        ok &= bool(jnp.allclose(attn, attn_ref, atol=2e-2, rtol=2e-2))

    assert ok, "kernel output does not match the pure-JAX reference"
    print("KERNEL_OK")
</pallas_src>

<mosaic_0001>
module attributes {stable_mosaic.version = 11 : i64} {
  func.func @_self_attention_kernel(%arg0: i32, %arg1: memref<1x8x32xbf16, #tpu.memory_space<vmem>>, %arg2: memref<1x8x32xbf16, #tpu.memory_space<vmem>>, %arg3: memref<1x8x32xbf16, #tpu.memory_space<vmem>>, %arg4: memref<8x8xf32, #tpu.memory_space<vmem>>, %arg5: memref<32x32xbf16, #tpu.memory_space<vmem>>, %arg6: memref<32x32xbf16, #tpu.memory_space<vmem>>, %arg7: memref<32x32xbf16, #tpu.memory_space<vmem>>, %arg8: memref<32x32xbf16, #tpu.memory_space<vmem>>, %arg9: memref<4x32xf32, #tpu.memory_space<vmem>>, %arg10: memref<1x8x32xf32, #tpu.memory_space<vmem>>, %arg11: memref<1x1x8x8xf32, #tpu.memory_space<vmem>>) attributes {dimension_semantics = [#tpu.dimension_semantics<parallel>], iteration_bounds = array<i64: 2>, scalar_prefetch = 0 : i64, scratch_operands = 0 : i64, tpu.core_type = #tpu.core_type<tc>, window_params = [{transform_indices = @transform_0, window_bounds = array<i64: 1, 8, 32>}, {transform_indices = @transform_1, window_bounds = array<i64: 1, 8, 32>}, {transform_indices = @transform_2, window_bounds = array<i64: 1, 8, 32>}, {pipeline_mode = #tpu.pipeline_mode<synchronous>, transform_indices = @transform_3, window_bounds = array<i64: 8, 8>}, {pipeline_mode = #tpu.pipeline_mode<synchronous>, transform_indices = @transform_4, window_bounds = array<i64: 32, 32>}, {pipeline_mode = #tpu.pipeline_mode<synchronous>, transform_indices = @transform_5, window_bounds = array<i64: 32, 32>}, {pipeline_mode = #tpu.pipeline_mode<synchronous>, transform_indices = @transform_6, window_bounds = array<i64: 32, 32>}, {pipeline_mode = #tpu.pipeline_mode<synchronous>, transform_indices = @transform_7, window_bounds = array<i64: 32, 32>}, {pipeline_mode = #tpu.pipeline_mode<synchronous>, transform_indices = @transform_8, window_bounds = array<i64: 4, 32>}, {transform_indices = @transform_9, window_bounds = array<i64: 1, 8, 32>}, {transform_indices = @transform_10, window_bounds = array<i64: 1, 1, 8, 8>}]} {
    %c0 = arith.constant 0 : index
    %c0_0 = arith.constant 0 : index
    %0 = vector.load %arg9[%c0, %c0_0] : memref<4x32xf32, #tpu.memory_space<vmem>>, vector<1x32xf32>
    %c1 = arith.constant 1 : index
    %c0_1 = arith.constant 0 : index
    %1 = vector.load %arg9[%c1, %c0_1] : memref<4x32xf32, #tpu.memory_space<vmem>>, vector<1x32xf32>
    %c2 = arith.constant 2 : index
    %c0_2 = arith.constant 0 : index
    %2 = vector.load %arg9[%c2, %c0_2] : memref<4x32xf32, #tpu.memory_space<vmem>>, vector<1x32xf32>
    %c3 = arith.constant 3 : index
    %c0_3 = arith.constant 0 : index
    %3 = vector.load %arg9[%c3, %c0_3] : memref<4x32xf32, #tpu.memory_space<vmem>>, vector<1x32xf32>
    %c0_4 = arith.constant 0 : index
    %c0_5 = arith.constant 0 : index
    %c0_6 = arith.constant 0 : index
    %4 = vector.load %arg1[%c0_4, %c0_5, %c0_6] : memref<1x8x32xbf16, #tpu.memory_space<vmem>>, vector<1x8x32xbf16>
    %5 = vector.shape_cast %4 : vector<1x8x32xbf16> to vector<8x32xbf16>
    %c0_7 = arith.constant 0 : index
    %c0_8 = arith.constant 0 : index
    %6 = vector.load %arg5[%c0_7, %c0_8] : memref<32x32xbf16, #tpu.memory_space<vmem>>, vector<32x32xbf16>
    %cst = arith.constant dense<0.000000e+00> : vector<8x32xf32>
    %7 = tpu.matmul %5, %6, %cst {dimension_numbers = #tpu.dot_dimension_numbers<[1], [0], [0], [1], [0, 0, 1, 1], [], []>} : vector<8x32xbf16>, vector<32x32xbf16>, vector<8x32xf32> -> vector<8x32xf32>
    %8 = vector.broadcast %0 : vector<1x32xf32> to vector<8x32xf32>
    %9 = arith.addf %7, %8 : vector<8x32xf32>
    %c0_9 = arith.constant 0 : index
    %c0_10 = arith.constant 0 : index
    %c0_11 = arith.constant 0 : index
    %10 = vector.load %arg2[%c0_9, %c0_10, %c0_11] : memref<1x8x32xbf16, #tpu.memory_space<vmem>>, vector<1x8x32xbf16>
    %11 = vector.shape_cast %10 : vector<1x8x32xbf16> to vector<8x32xbf16>
    %c0_12 = arith.constant 0 : index
    %c0_13 = arith.constant 0 : index
    %12 = vector.load %arg6[%c0_12, %c0_13] : memref<32x32xbf16, #tpu.memory_space<vmem>>, vector<32x32xbf16>
    %cst_14 = arith.constant dense<0.000000e+00> : vector<8x32xf32>
    %13 = tpu.matmul %11, %12, %cst_14 {dimension_numbers = #tpu.dot_dimension_numbers<[1], [0], [0], [1], [0, 0, 1, 1], [], []>} : vector<8x32xbf16>, vector<32x32xbf16>, vector<8x32xf32> -> vector<8x32xf32>
    %14 = vector.broadcast %1 : vector<1x32xf32> to vector<8x32xf32>
    %15 = arith.addf %13, %14 : vector<8x32xf32>
    %c0_15 = arith.constant 0 : index
    %c0_16 = arith.constant 0 : index
    %c0_17 = arith.constant 0 : index
    %16 = vector.load %arg3[%c0_15, %c0_16, %c0_17] : memref<1x8x32xbf16, #tpu.memory_space<vmem>>, vector<1x8x32xbf16>
    %17 = vector.shape_cast %16 : vector<1x8x32xbf16> to vector<8x32xbf16>
    %c0_18 = arith.constant 0 : index
    %c0_19 = arith.constant 0 : index
    %18 = vector.load %arg7[%c0_18, %c0_19] : memref<32x32xbf16, #tpu.memory_space<vmem>>, vector<32x32xbf16>
    %cst_20 = arith.constant dense<0.000000e+00> : vector<8x32xf32>
    %19 = tpu.matmul %17, %18, %cst_20 {dimension_numbers = #tpu.dot_dimension_numbers<[1], [0], [0], [1], [0, 0, 1, 1], [], []>} : vector<8x32xbf16>, vector<32x32xbf16>, vector<8x32xf32> -> vector<8x32xf32>
    %20 = vector.broadcast %2 : vector<1x32xf32> to vector<8x32xf32>
    %21 = arith.addf %19, %20 : vector<8x32xf32>
    %c0_21 = arith.constant 0 : index
    %c0_22 = arith.constant 0 : index
    %22 = vector.load %arg4[%c0_21, %c0_22] : memref<8x8xf32, #tpu.memory_space<vmem>>, vector<8x8xf32>
    %c0_23 = arith.constant 0 : index
    %c0_24 = arith.constant 0 : index
    %23 = vector.load %arg8[%c0_23, %c0_24] : memref<32x32xbf16, #tpu.memory_space<vmem>>, vector<32x32xbf16>
    %24 = arith.truncf %9 : vector<8x32xf32> to vector<8x32xbf16>
    %25 = arith.truncf %15 : vector<8x32xf32> to vector<8x32xbf16>
    "tpu.trace_start"() <{level = 10 : i32, message = "qd,kd->qk"}> : () -> ()
    %cst_25 = arith.constant dense<0.000000e+00> : vector<8x8xf32>
    %26 = tpu.matmul %24, %25, %cst_25 {dimension_numbers = #tpu.dot_dimension_numbers<[1], [1], [0], [0], [0, 0, 1, 0], [], []>} : vector<8x32xbf16>, vector<8x32xbf16>, vector<8x8xf32> -> vector<8x8xf32>
    "tpu.trace_stop"() : () -> ()
    %27 = arith.addf %26, %22 : vector<8x8xf32>
    %cst_26 = arith.constant dense<0xFF800000> : vector<8xf32>
    %28 = vector.multi_reduction <maximumf>, %27, %cst_26 [1] : vector<8x8xf32> to vector<8xf32>
    %29 = vector.shape_cast %28 : vector<8xf32> to vector<8x1xf32>
    %30 = vector.broadcast %29 : vector<8x1xf32> to vector<8x8xf32>
    %31 = arith.subf %27, %30 : vector<8x8xf32>
    %32 = math.exp %31 : vector<8x8xf32>
    %cst_27 = arith.constant dense<0.000000e+00> : vector<8xf32>
    %33 = vector.multi_reduction <add>, %32, %cst_27 [1] : vector<8x8xf32> to vector<8xf32>
    %34 = vector.shape_cast %33 : vector<8xf32> to vector<8x1xf32>
    %cst_28 = arith.constant 1.000000e+00 : f32
    %35 = vector.broadcast %cst_28 : f32 to vector<8x1xf32>
    %36 = arith.divf %35, %34 : vector<8x1xf32>
    %37 = vector.broadcast %36 : vector<8x1xf32> to vector<8x8xf32>
    %38 = arith.mulf %32, %37 : vector<8x8xf32>
    %c0_29 = arith.constant 0 : index
    %c0_30 = arith.constant 0 : index
    %c0_31 = arith.constant 0 : index
    %c0_32 = arith.constant 0 : index
    %39 = vector.load %arg11[%c0_29, %c0_30, %c0_31, %c0_32] : memref<1x1x8x8xf32, #tpu.memory_space<vmem>>, vector<1x1x8x8xf32>
    %40 = vector.shape_cast %39 : vector<1x1x8x8xf32> to vector<8x8xf32>
    %41 = vector.shape_cast %38 : vector<8x8xf32> to vector<1x1x8x8xf32>
    tpu.vector_store %arg11[%c0_29, %c0_30, %c0_31, %c0_32], %41 {strides = array<i32>} : memref<1x1x8x8xf32, #tpu.memory_space<vmem>>, vector<1x1x8x8xf32>,
    %42 = arith.truncf %38 : vector<8x8xf32> to vector<8x8xbf16>
    %43 = arith.truncf %21 : vector<8x32xf32> to vector<8x32xbf16>
    "tpu.trace_start"() <{level = 10 : i32, message = "qk,kd->qd"}> : () -> ()
    %cst_33 = arith.constant dense<0.000000e+00> : vector<8x32xf32>
    %44 = tpu.matmul %42, %43, %cst_33 {dimension_numbers = #tpu.dot_dimension_numbers<[1], [0], [0], [1], [0, 0, 1, 1], [], []>} : vector<8x8xbf16>, vector<8x32xbf16>, vector<8x32xf32> -> vector<8x32xf32>
    "tpu.trace_stop"() : () -> ()
    %45 = arith.truncf %44 : vector<8x32xf32> to vector<8x32xbf16>
    %cst_34 = arith.constant dense<0.000000e+00> : vector<8x32xf32>
    %46 = tpu.matmul %45, %23, %cst_34 {dimension_numbers = #tpu.dot_dimension_numbers<[1], [0], [0], [1], [0, 0, 1, 1], [], []>} : vector<8x32xbf16>, vector<32x32xbf16>, vector<8x32xf32> -> vector<8x32xf32>
    %47 = vector.broadcast %3 : vector<1x32xf32> to vector<8x32xf32>
    %48 = arith.addf %46, %47 : vector<8x32xf32>
    %c0_35 = arith.constant 0 : index
    %c0_36 = arith.constant 0 : index
    %c0_37 = arith.constant 0 : index
    %49 = vector.load %arg10[%c0_35, %c0_36, %c0_37] : memref<1x8x32xf32, #tpu.memory_space<vmem>>, vector<1x8x32xf32>
    %50 = vector.shape_cast %49 : vector<1x8x32xf32> to vector<8x32xf32>
    %51 = vector.shape_cast %48 : vector<8x32xf32> to vector<1x8x32xf32>
    tpu.vector_store %arg10[%c0_35, %c0_36, %c0_37], %51 {strides = array<i32>} : memref<1x8x32xf32, #tpu.memory_space<vmem>>, vector<1x8x32xf32>,
    return
  }
  func.func @transform_0(%arg0: i32) -> (i32, i32, i32) {
    %c0_i32 = arith.constant 0 : i32
    %c0_i32_0 = arith.constant 0 : i32
    %c0_i32_1 = arith.constant 0 : i32
    return %arg0, %c0_i32, %c0_i32_0 : i32, i32, i32
  }
  func.func @transform_1(%arg0: i32) -> (i32, i32, i32) {
    %c0_i32 = arith.constant 0 : i32
    %c0_i32_0 = arith.constant 0 : i32
    %c0_i32_1 = arith.constant 0 : i32
    return %arg0, %c0_i32, %c0_i32_0 : i32, i32, i32
  }
  func.func @transform_2(%arg0: i32) -> (i32, i32, i32) {
    %c0_i32 = arith.constant 0 : i32
    %c0_i32_0 = arith.constant 0 : i32
    %c0_i32_1 = arith.constant 0 : i32
    return %arg0, %c0_i32, %c0_i32_0 : i32, i32, i32
  }
  func.func @transform_3(%arg0: i32) -> (i32, i32) {
    %c0_i32 = arith.constant 0 : i32
    %c0_i32_0 = arith.constant 0 : i32
    %c0_i32_1 = arith.constant 0 : i32
    return %c0_i32, %c0_i32_0 : i32, i32
  }
  func.func @transform_4(%arg0: i32) -> (i32, i32) {
    %c0_i32 = arith.constant 0 : i32
    %c0_i32_0 = arith.constant 0 : i32
    %c0_i32_1 = arith.constant 0 : i32
    return %c0_i32, %c0_i32_0 : i32, i32
  }
  func.func @transform_5(%arg0: i32) -> (i32, i32) {
    %c0_i32 = arith.constant 0 : i32
    %c0_i32_0 = arith.constant 0 : i32
    %c0_i32_1 = arith.constant 0 : i32
    return %c0_i32, %c0_i32_0 : i32, i32
  }
  func.func @transform_6(%arg0: i32) -> (i32, i32) {
    %c0_i32 = arith.constant 0 : i32
    %c0_i32_0 = arith.constant 0 : i32
    %c0_i32_1 = arith.constant 0 : i32
    return %c0_i32, %c0_i32_0 : i32, i32
  }
  func.func @transform_7(%arg0: i32) -> (i32, i32) {
    %c0_i32 = arith.constant 0 : i32
    %c0_i32_0 = arith.constant 0 : i32
    %c0_i32_1 = arith.constant 0 : i32
    return %c0_i32, %c0_i32_0 : i32, i32
  }
  func.func @transform_8(%arg0: i32) -> (i32, i32) {
    %c0_i32 = arith.constant 0 : i32
    %c0_i32_0 = arith.constant 0 : i32
    %c0_i32_1 = arith.constant 0 : i32
    return %c0_i32, %c0_i32_0 : i32, i32
  }
  func.func @transform_9(%arg0: i32) -> (i32, i32, i32) {
    %c0_i32 = arith.constant 0 : i32
    %c0_i32_0 = arith.constant 0 : i32
    %c0_i32_1 = arith.constant 0 : i32
    return %arg0, %c0_i32, %c0_i32_0 : i32, i32, i32
  }
  func.func @transform_10(%arg0: i32) -> (i32, i32, i32, i32) {
    %c0_i32 = arith.constant 0 : i32
    %c0_i32_0 = arith.constant 0 : i32
    %c0_i32_1 = arith.constant 0 : i32
    %c0_i32_2 = arith.constant 0 : i32
    return %arg0, %c0_i32, %c0_i32_0, %c0_i32_1 : i32, i32, i32, i32
  }
}

</mosaic_0001>

<llo_original>
// kernel: tpu_custom_call.1
$region0: #{tpu_custom_call.1}
  #allocation0 [shape = 'u32[]', space=smem, size = 0x4, offset = 0x4, fixed_abs, tag = 'smem constant byte address 0x4 - core index']
  #allocation1 [shape = 'u32[144,128]{1,0:T(1,128)}', space=vmem, size = 0x12000, scoped, tag = 'internal scratch']
  %s0 = inlined_call_operand.hbm [shape: bf16[2,8,32], index: 0, kind: input, shape index: {}]
  %s1 = inlined_call_operand.hbm [shape: bf16[2,8,32], index: 1, kind: input, shape index: {}]
  %s2 = inlined_call_operand.hbm [shape: bf16[2,8,32], index: 2, kind: input, shape index: {}]
  %s3 = inlined_call_operand.hbm [shape: f32[8,8], index: 3, kind: input, shape index: {}]
  %s4 = inlined_call_operand.hbm [shape: bf16[32,32], index: 4, kind: input, shape index: {}]
  %s5 = inlined_call_operand.vmem [shape: bf16[32,32], index: 5, kind: input, shape index: {}]
  %s6 = inlined_call_operand.hbm [shape: bf16[32,32], index: 6, kind: input, shape index: {}]
  %s7 = inlined_call_operand.hbm [shape: bf16[32,32], index: 7, kind: input, shape index: {}]
  %s8 = inlined_call_operand.vmem [shape: f32[4,32], index: 8, kind: input, shape index: {}]
  %s9 = inlined_call_operand.hbm [shape: f32[2,8,32], index: 9, kind: output, shape index: {0}]
  %s10 = inlined_call_operand.hbm [shape: f32[2,1,8,8], index: 10, kind: output, shape index: {1}]
  %11 = xla_tuple %s9, %s10
  %s12 = sld [smem:[#allocation0]]
  $region105: #{tpu_custom_call.1} parent=0
    _
  %s14 = ssub.s32 1, %s12
  %s15 = scalar_select 0, %s14, %s12
  $region1: #{tpu_custom_call.1} parent=0
    #allocation2 [shape = 'u8[4096]{0}', space=vmem, size = 0x1000, scoped, tag = 'input window, operand 0']
    #allocation3 [shape = 's32[2]{0}', space=sflag, size = 0x8, scoped, tag = 'scoped memory for tpu_custom_call.1']
    #allocation4 [shape = 's32[2]{0}', space=sflag, size = 0x8, scoped, tag = 'scoped memory for tpu_custom_call.1']
    #allocation5 [shape = 'u8[4096]{0}', space=vmem, size = 0x1000, scoped, tag = 'input window, operand 1']
    #allocation6 [shape = 's32[2]{0}', space=sflag, size = 0x8, scoped, tag = 'scoped memory for tpu_custom_call.1']
    #allocation7 [shape = 'u8[4096]{0}', space=vmem, size = 0x1000, scoped, tag = 'input window, operand 2']
    #allocation8 [shape = 'u8[4096]{0}', space=vmem, size = 0x1000, scoped, tag = 'input window, operand 3, single buffered']
    #allocation9 [shape = 's32[1]{0}', space=sflag, size = 0x4, scoped, tag = 'scoped memory for tpu_custom_call.1']
    #allocation10 [shape = 'u8[8192]{0}', space=vmem, size = 0x2000, scoped, tag = 'input window, operand 4, single buffered']
    #allocation11 [shape = 'u8[8192]{0}', space=vmem, size = 0x2000, scoped, tag = 'input window, operand 6, single buffered']
    #allocation12 [shape = 's32[1]{0}', space=sflag, size = 0x4, scoped, tag = 'scoped memory for tpu_custom_call.1']
    #allocation13 [shape = 'u8[8192]{0}', space=vmem, size = 0x2000, scoped, tag = 'input window, operand 7, single buffered']
    #allocation14 [shape = 'u8[8192]{0}', space=vmem, size = 0x2000, scoped, tag = 'output window, operand 0']
    #allocation15 [shape = 'u8[8192]{0}', space=vmem, size = 0x2000, scoped, tag = 'output window, operand 1']
    #allocation16 [shape = 's32[2]{0}', space=sflag, size = 0x8, scoped, tag = 'scoped memory for tpu_custom_call.1']
    %16 = vsyncpa [#allocation3], 0
    %s17 = scalar_lea.sflag [#allocation3], 1
    %18 = vsyncpa %s17, 0
    %19 = vsyncpa [#allocation6], 0
    %s20 = scalar_lea.sflag [#allocation6], 1
    %21 = vsyncpa %s20, 0
    %22 = vsyncpa [#allocation9], 0
    %23 = vsyncpa [#allocation12], 0
    %24 = vsyncpa [#allocation4], 0
    %s25 = scalar_lea.sflag [#allocation4], 1
    %26 = vsyncpa %s25, 0
    %27 = vsyncpa [#allocation16], 0
    %s28 = scalar_lea.sflag [#allocation16], 1
    %29 = vsyncpa %s28, 0
    loop: start=0, step=1, limit=4
    $region2: #{tpu_custom_call.1} parent=1 // loop_pre_header
      _
    $region3: #{tpu_custom_call.1} parent=1 // loop_header
      %s31 = sphi 0, %s35
      %p32 = scmp.ge.s32.totalorder %s31, 4
      %s41 = sphi 0, %s43
      %s44 = sphi 0, %s41
      %s45 = sphi 0, %s44
      %s61 = sphi 0, %s45
      %s67 = sphi 0, %s69
      %s70 = sphi 0, %s67
      %s71 = sphi 0, %s70
      %s87 = sphi 0, %s71
      %s93 = sphi 0, %s95
      %s96 = sphi 0, %s93
      %s97 = sphi 0, %s96
      %s113 = sphi 0, %s97
      %s117 = sphi 0, %s117
      %s119 = sphi 0, %s117
      %s120 = sphi 0, %s119
      %s134 = sphi 0, %s120
      %s138 = sphi 0, %s138
      %s140 = sphi 0, %s138
      %s141 = sphi 0, %s140
      %s155 = sphi 0, %s141
      %s159 = sphi 0, %s159
      %s161 = sphi 0, %s159
      %s162 = sphi 0, %s161
      %s176 = sphi 0, %s162
      %s180 = sphi 0, %s180
      %s182 = sphi 0, %s180
      %s183 = sphi 0, %s182
      %s197 = sphi 0, %s183
      %s201 = sphi 0, %s201
      %s203 = sphi 0, %s201
      %s204 = sphi 0, %s203
      %s218 = sphi 0, %s204
      %s222 = sphi 0, %s222
      %s224 = sphi 0, %s222
      %s225 = sphi 0, %s224
      %s239 = sphi 0, %s225
      %s245 = sphi 0, %s247
      %s248 = sphi 0, %s245
      %s249 = sphi 0, %s248
      %s265 = sphi 0, %s249
      %s271 = sphi 0, %s273
      %s274 = sphi 0, %s271
      %s275 = sphi 0, %s274
      %s291 = sphi 0, %s275
    $region4: #{tpu_custom_call.1} parent=1 // loop_header_branch
      %34 = sbr.rel (%p32) target = $region8
    $region5: #{tpu_custom_call.1} parent=1 // loop_body
      %s36 = ssub.s32 %s31, 1
      %s37 = ssub.s32 %s31, 2
      %s38 = sadd.s32 %s31, 1
      %s39 = ssub.s32 %s31, %s38
      %p40 = scmp.eq.s32.totalorder %s39, 0
      %s42 = sadd.s32 %s41, 1
      %s43 = scalar_select %p40, %s41, %s42
      %p46 = pneg %p40
      %p47 = scmp.eq.s32.totalorder %s31, 1
      %p48 = por %p46, %p47
      %p49 = scmp.ne.s32.totalorder %s41, %s44
      %p50 = scmp.eq.s32.totalorder %s31, 0
      %p51 = por %p49, %p50
      %p52 = scmp.ne.s32.totalorder %s41, %s44
      %p53 = scmp.eq.s32.totalorder %s36, 1
      %p54 = por %p52, %p53
      %p55 = scmp.ne.s32.totalorder %s44, %s45
      %p56 = scmp.eq.s32.totalorder %s36, 0
      %p57 = por %p55, %p56
      %p58 = scmp.ne.s32.totalorder %s44, %s45
      %p59 = scmp.eq.s32.totalorder %s37, 1
      %p60 = por %p58, %p59
      %p62 = scmp.ne.s32.totalorder %s45, %s61
      %p63 = scmp.eq.s32.totalorder %s37, 0
      %p64 = por %p62, %p63
      %s65 = ssub.s32 %s31, %s38
      %p66 = scmp.eq.s32.totalorder %s65, 0
      %s68 = sadd.s32 %s67, 1
      %s69 = scalar_select %p66, %s67, %s68
      %p72 = pneg %p66
      %p73 = scmp.eq.s32.totalorder %s31, 1
      %p74 = por %p72, %p73
      %p75 = scmp.ne.s32.totalorder %s67, %s70
      %p76 = scmp.eq.s32.totalorder %s31, 0
      %p77 = por %p75, %p76
      %p78 = scmp.ne.s32.totalorder %s67, %s70
      %p79 = scmp.eq.s32.totalorder %s36, 1
      %p80 = por %p78, %p79
      %p81 = scmp.ne.s32.totalorder %s70, %s71
      %p82 = scmp.eq.s32.totalorder %s36, 0
      %p83 = por %p81, %p82
      %p84 = scmp.ne.s32.totalorder %s70, %s71
      %p85 = scmp.eq.s32.totalorder %s37, 1
      %p86 = por %p84, %p85
      %p88 = scmp.ne.s32.totalorder %s71, %s87
      %p89 = scmp.eq.s32.totalorder %s37, 0
      %p90 = por %p88, %p89
      %s91 = ssub.s32 %s31, %s38
      %p92 = scmp.eq.s32.totalorder %s91, 0
      %s94 = sadd.s32 %s93, 1
      %s95 = scalar_select %p92, %s93, %s94
      %p98 = pneg %p92
      %p99 = scmp.eq.s32.totalorder %s31, 1
      %p100 = por %p98, %p99
      %p101 = scmp.ne.s32.totalorder %s93, %s96
      %p102 = scmp.eq.s32.totalorder %s31, 0
      %p103 = por %p101, %p102
      %p104 = scmp.ne.s32.totalorder %s93, %s96
      %p105 = scmp.eq.s32.totalorder %s36, 1
      %p106 = por %p104, %p105
      %p107 = scmp.ne.s32.totalorder %s96, %s97
      %p108 = scmp.eq.s32.totalorder %s36, 0
      %p109 = por %p107, %p108
      %p110 = scmp.ne.s32.totalorder %s96, %s97
      %p111 = scmp.eq.s32.totalorder %s37, 1
      %p112 = por %p110, %p111
      %p114 = scmp.ne.s32.totalorder %s97, %s113
      %p115 = scmp.eq.s32.totalorder %s37, 0
      %p116 = por %p114, %p115
      %s118 = sadd.s32 %s117, 1
      %p121 = scmp.eq.s32.totalorder %s31, 1
      %p122 = scmp.ne.s32.totalorder %s117, %s119
      %p123 = scmp.eq.s32.totalorder %s31, 0
      %p124 = por %p122, %p123
      %p125 = scmp.ne.s32.totalorder %s117, %s119
      %p126 = scmp.eq.s32.totalorder %s36, 1
      %p127 = por %p125, %p126
      %p128 = scmp.ne.s32.totalorder %s119, %s120
      %p129 = scmp.eq.s32.totalorder %s36, 0
      %p130 = por %p128, %p129
      %p131 = scmp.ne.s32.totalorder %s119, %s120
      %p132 = scmp.eq.s32.totalorder %s37, 1
      %p133 = por %p131, %p132
      %p135 = scmp.ne.s32.totalorder %s120, %s134
      %p136 = scmp.eq.s32.totalorder %s37, 0
      %p137 = por %p135, %p136
      %s139 = sadd.s32 %s138, 1
      %p142 = scmp.eq.s32.totalorder %s31, 1
      %p143 = scmp.ne.s32.totalorder %s138, %s140
      %p144 = scmp.eq.s32.totalorder %s31, 0
      %p145 = por %p143, %p144
      %p146 = scmp.ne.s32.totalorder %s138, %s140
      %p147 = scmp.eq.s32.totalorder %s36, 1
      %p148 = por %p146, %p147
      %p149 = scmp.ne.s32.totalorder %s140, %s141
      %p150 = scmp.eq.s32.totalorder %s36, 0
      %p151 = por %p149, %p150
      %p152 = scmp.ne.s32.totalorder %s140, %s141
      %p153 = scmp.eq.s32.totalorder %s37, 1
      %p154 = por %p152, %p153
      %p156 = scmp.ne.s32.totalorder %s141, %s155
      %p157 = scmp.eq.s32.totalorder %s37, 0
      %p158 = por %p156, %p157
      %s160 = sadd.s32 %s159, 1
      %p163 = scmp.eq.s32.totalorder %s31, 1
      %p164 = scmp.ne.s32.totalorder %s159, %s161
      %p165 = scmp.eq.s32.totalorder %s31, 0
      %p166 = por %p164, %p165
      %p167 = scmp.ne.s32.totalorder %s159, %s161
      %p168 = scmp.eq.s32.totalorder %s36, 1
      %p169 = por %p167, %p168
      %p170 = scmp.ne.s32.totalorder %s161, %s162
      %p171 = scmp.eq.s32.totalorder %s36, 0
      %p172 = por %p170, %p171
      %p173 = scmp.ne.s32.totalorder %s161, %s162
      %p174 = scmp.eq.s32.totalorder %s37, 1
      %p175 = por %p173, %p174
      %p177 = scmp.ne.s32.totalorder %s162, %s176
      %p178 = scmp.eq.s32.totalorder %s37, 0
      %p179 = por %p177, %p178
      %s181 = sadd.s32 %s180, 1
      %p184 = scmp.eq.s32.totalorder %s31, 1
      %p185 = scmp.ne.s32.totalorder %s180, %s182
      %p186 = scmp.eq.s32.totalorder %s31, 0
      %p187 = por %p185, %p186
      %p188 = scmp.ne.s32.totalorder %s180, %s182
      %p189 = scmp.eq.s32.totalorder %s36, 1
      %p190 = por %p188, %p189
      %p191 = scmp.ne.s32.totalorder %s182, %s183
      %p192 = scmp.eq.s32.totalorder %s36, 0
      %p193 = por %p191, %p192
      %p194 = scmp.ne.s32.totalorder %s182, %s183
      %p195 = scmp.eq.s32.totalorder %s37, 1
      %p196 = por %p194, %p195
      %p198 = scmp.ne.s32.totalorder %s183, %s197
      %p199 = scmp.eq.s32.totalorder %s37, 0
      %p200 = por %p198, %p199
      %s202 = sadd.s32 %s201, 1
      %p205 = scmp.eq.s32.totalorder %s31, 1
      %p206 = scmp.ne.s32.totalorder %s201, %s203
      %p207 = scmp.eq.s32.totalorder %s31, 0
      %p208 = por %p206, %p207
      %p209 = scmp.ne.s32.totalorder %s201, %s203
      %p210 = scmp.eq.s32.totalorder %s36, 1
      %p211 = por %p209, %p210
      %p212 = scmp.ne.s32.totalorder %s203, %s204
      %p213 = scmp.eq.s32.totalorder %s36, 0
      %p214 = por %p212, %p213
      %p215 = scmp.ne.s32.totalorder %s203, %s204
      %p216 = scmp.eq.s32.totalorder %s37, 1
      %p217 = por %p215, %p216
      %p219 = scmp.ne.s32.totalorder %s204, %s218
      %p220 = scmp.eq.s32.totalorder %s37, 0
      %p221 = por %p219, %p220
      %s223 = sadd.s32 %s222, 1
      %p226 = scmp.eq.s32.totalorder %s31, 1
      %p227 = scmp.ne.s32.totalorder %s222, %s224
      %p228 = scmp.eq.s32.totalorder %s31, 0
      %p229 = por %p227, %p228
      %p230 = scmp.ne.s32.totalorder %s222, %s224
      %p231 = scmp.eq.s32.totalorder %s36, 1
      %p232 = por %p230, %p231
      %p233 = scmp.ne.s32.totalorder %s224, %s225
      %p234 = scmp.eq.s32.totalorder %s36, 0
      %p235 = por %p233, %p234
      %p236 = scmp.ne.s32.totalorder %s224, %s225
      %p237 = scmp.eq.s32.totalorder %s37, 1
      %p238 = por %p236, %p237
      %p240 = scmp.ne.s32.totalorder %s225, %s239
      %p241 = scmp.eq.s32.totalorder %s37, 0
      %p242 = por %p240, %p241
      %s243 = ssub.s32 %s31, %s38
      %p244 = scmp.eq.s32.totalorder %s243, 0
      %s246 = sadd.s32 %s245, 1
      %s247 = scalar_select %p244, %s245, %s246
      %p250 = pneg %p244
      %p251 = scmp.eq.s32.totalorder %s31, 1
      %p252 = por %p250, %p251
      %p253 = scmp.ne.s32.totalorder %s245, %s248
      %p254 = scmp.eq.s32.totalorder %s31, 0
      %p255 = por %p253, %p254
      %p256 = scmp.ne.s32.totalorder %s245, %s248
      %p257 = scmp.eq.s32.totalorder %s36, 1
      %p258 = por %p256, %p257
      %p259 = scmp.ne.s32.totalorder %s248, %s249
      %p260 = scmp.eq.s32.totalorder %s36, 0
      %p261 = por %p259, %p260
      %p262 = scmp.ne.s32.totalorder %s248, %s249
      %p263 = scmp.eq.s32.totalorder %s37, 1
      %p264 = por %p262, %p263
      %p266 = scmp.ne.s32.totalorder %s249, %s265
      %p267 = scmp.eq.s32.totalorder %s37, 0
      %p268 = por %p266, %p267
      %s269 = ssub.s32 %s31, %s38
      %p270 = scmp.eq.s32.totalorder %s269, 0
      %s272 = sadd.s32 %s271, 1
      %s273 = scalar_select %p270, %s271, %s272
      %p276 = pneg %p270
      %p277 = scmp.eq.s32.totalorder %s31, 1
      %p278 = por %p276, %p277
      %p279 = scmp.ne.s32.totalorder %s271, %s274
      %p280 = scmp.eq.s32.totalorder %s31, 0
      %p281 = por %p279, %p280
      %p282 = scmp.ne.s32.totalorder %s271, %s274
      %p283 = scmp.eq.s32.totalorder %s36, 1
      %p284 = por %p282, %p283
      %p285 = scmp.ne.s32.totalorder %s274, %s275
      %p286 = scmp.eq.s32.totalorder %s36, 0
      %p287 = por %p285, %p286
      %p288 = scmp.ne.s32.totalorder %s274, %s275
      %p289 = scmp.eq.s32.totalorder %s37, 1
      %p290 = por %p288, %p289
      %p292 = scmp.ne.s32.totalorder %s275, %s291
      %p293 = scmp.eq.s32.totalorder %s37, 0
      %p294 = por %p292, %p293
      %p295 = scmp.le.s32.totalorder 1, %s31
      %p296 = scmp.lt.s32.totalorder %s31, 3
      %p297 = pnand %p295, %p296
      %p298 = pneg %p297
      // Predicated region
      $region9: #{tpu_custom_call.1} parent=5 // pred_check
        _
      $region10: #{tpu_custom_call.1} parent=5 // pred_check_branch
        %300 = sbr.rel (%p297) target = $region12
      $region11: #{tpu_custom_call.1} parent=5 // pred_region
        %s301 = ssub.s32 %s31, 1
        // Predicated region
        $region13: #{tpu_custom_call.1} parent=11 // pred_check
          %p302 = pneg %p130
        $region14: #{tpu_custom_call.1} parent=11 // pred_check_branch
          %304 = sbr.rel (%p302) target = $region16
        $region15: #{tpu_custom_call.1} parent=11 // pred_region
          %s306 = ssub.s32 128, 128
          %307 = vsyncadd [#allocation9], %s306
          %s309 = sshll.u32 [#allocation8], 4
          %s310 = int_to_ptr.vmem [resolvable:$true] %s309
          %312 = dma.hbm_to_vmem [thread:$0]  %s3, 128, %s310, [#allocation9]
        $region16: #{tpu_custom_call.1} parent=11 // pred_fallthru
          _
        // Predicated region
        $region17: #{tpu_custom_call.1} parent=11 // pred_check
          %p313 = pneg %p151
        $region18: #{tpu_custom_call.1} parent=11 // pred_check_branch
          %315 = sbr.rel (%p313) target = $region20
        $region19: #{tpu_custom_call.1} parent=11 // pred_region
          %s317 = ssub.s32 256, 256
          %318 = vsyncadd [#allocation9], %s317
          %s319 = sshll.u32 [#allocation10], 4
          %s320 = int_to_ptr.vmem [resolvable:$true] %s319
          %325 = dma.hbm_to_vmem [thread:$0]  %s4, 256, %s320, [#allocation9], 64, 64, 4
        $region20: #{tpu_custom_call.1} parent=11 // pred_fallthru
          _
        // Predicated region
        $region21: #{tpu_custom_call.1} parent=11 // pred_check
          %p326 = pneg %p172
        $region22: #{tpu_custom_call.1} parent=11 // pred_check_branch
          %328 = sbr.rel (%p326) target = $region24
        $region23: #{tpu_custom_call.1} parent=11 // pred_region
          _
        $region24: #{tpu_custom_call.1} parent=11 // pred_fallthru
          _
        // Predicated region
        $region25: #{tpu_custom_call.1} parent=11 // pred_check
          %p329 = pneg %p193
        $region26: #{tpu_custom_call.1} parent=11 // pred_check_branch
          %331 = sbr.rel (%p329) target = $region28
        $region27: #{tpu_custom_call.1} parent=11 // pred_region
          %s333 = ssub.s32 256, 256
          %334 = vsyncadd [#allocation12], %s333
          %s335 = sshll.u32 [#allocation11], 4
          %s336 = int_to_ptr.vmem [resolvable:$true] %s335
          %341 = dma.hbm_to_vmem [thread:$0]  %s6, 256, %s336, [#allocation12], 64, 64, 4
        $region28: #{tpu_custom_call.1} parent=11 // pred_fallthru
          _
        // Predicated region
        $region29: #{tpu_custom_call.1} parent=11 // pred_check
          %p342 = pneg %p214
        $region30: #{tpu_custom_call.1} parent=11 // pred_check_branch
          %344 = sbr.rel (%p342) target = $region32
        $region31: #{tpu_custom_call.1} parent=11 // pred_region
          %s346 = ssub.s32 256, 256
          %347 = vsyncadd [#allocation12], %s346
          %s348 = sshll.u32 [#allocation13], 4
          %s349 = int_to_ptr.vmem [resolvable:$true] %s348
          %354 = dma.hbm_to_vmem [thread:$0]  %s7, 256, %s349, [#allocation12], 64, 64, 4
        $region32: #{tpu_custom_call.1} parent=11 // pred_fallthru
          _
        // Predicated region
        $region33: #{tpu_custom_call.1} parent=11 // pred_check
          %p355 = pneg %p235
        $region34: #{tpu_custom_call.1} parent=11 // pred_check_branch
          %357 = sbr.rel (%p355) target = $region36
        $region35: #{tpu_custom_call.1} parent=11 // pred_region
          _
        $region36: #{tpu_custom_call.1} parent=11 // pred_fallthru
          _
      $region12: #{tpu_custom_call.1} parent=5 // pred_fallthru
        _
      %p358 = scmp.lt.s32.totalorder %s31, 2
      // Predicated region
      $region37: #{tpu_custom_call.1} parent=5 // pred_check
        %p359 = pneg %p358
      $region38: #{tpu_custom_call.1} parent=5 // pred_check_branch
        %361 = sbr.rel (%p359) target = $region40
      $region39: #{tpu_custom_call.1} parent=5 // pred_region
        // Predicated region
        $region41: #{tpu_custom_call.1} parent=39 // pred_check
          %p362 = pneg %p51
        $region42: #{tpu_custom_call.1} parent=39 // pred_check_branch
          %364 = sbr.rel (%p362) target = $region44
        $region43: #{tpu_custom_call.1} parent=39 // pred_region
          %s365 = sand.u32 %s41, 1
          %s366 = scalar_lea.sflag [#allocation3], %s365
          %s367 = sand.u32 %s41, 1
          %s368 = smul.addr %s367, 4
          %s369 = scalar_lea.vmem [#allocation2], %s368
          %s371 = ssub.s32 64, 64
          %372 = vsyncadd %s366, %s371
          %s373 = smul.addr %s31, 64
          %s374 = scalar_lea.hbm %s0, %s373
          %s376 = sshll.u32 %s369, 4
          %s377 = int_to_ptr.vmem [resolvable:$true] %s376
          %379 = dma.hbm_to_vmem [thread:$0]  %s374, 64, %s377, %s366
        $region44: #{tpu_custom_call.1} parent=39 // pred_fallthru
          _
        // Predicated region
        $region45: #{tpu_custom_call.1} parent=39 // pred_check
          %p380 = pneg %p77
        $region46: #{tpu_custom_call.1} parent=39 // pred_check_branch
          %382 = sbr.rel (%p380) target = $region48
        $region47: #{tpu_custom_call.1} parent=39 // pred_region
          %s383 = sand.u32 %s31, 1
          %s384 = scalar_lea.sflag [#allocation6], %s383
          %s385 = sand.u32 %s67, 1
          %s386 = smul.addr %s385, 4
          %s387 = scalar_lea.vmem [#allocation5], %s386
          %s389 = ssub.s32 64, 64
          %390 = vsyncadd %s384, %s389
          %s391 = smul.addr %s31, 64
          %s392 = scalar_lea.hbm %s1, %s391
          %s394 = sshll.u32 %s387, 4
          %s395 = int_to_ptr.vmem [resolvable:$true] %s394
          %397 = dma.hbm_to_vmem [thread:$0]  %s392, 64, %s395, %s384
        $region48: #{tpu_custom_call.1} parent=39 // pred_fallthru
          _
        // Predicated region
        $region49: #{tpu_custom_call.1} parent=39 // pred_check
          %p398 = pneg %p103
        $region50: #{tpu_custom_call.1} parent=39 // pred_check_branch
          %400 = sbr.rel (%p398) target = $region52
        $region51: #{tpu_custom_call.1} parent=39 // pred_region
          %s401 = sand.u32 %s31, 1
          %s402 = scalar_lea.sflag [#allocation6], %s401
          %s403 = sand.u32 %s93, 1
          %s404 = smul.addr %s403, 4
          %s405 = scalar_lea.vmem [#allocation7], %s404
          %s407 = ssub.s32 64, 64
          %408 = vsyncadd %s402, %s407
          %s409 = smul.addr %s31, 64
          %s410 = scalar_lea.hbm %s2, %s409
          %s412 = sshll.u32 %s405, 4
          %s413 = int_to_ptr.vmem [resolvable:$true] %s412
          %415 = dma.hbm_to_vmem [thread:$0]  %s410, 64, %s413, %s402
        $region52: #{tpu_custom_call.1} parent=39 // pred_fallthru
          _
      $region40: #{tpu_custom_call.1} parent=5 // pred_fallthru
        _
      %p416 = scmp.le.s32.totalorder 1, %s31
      %p417 = scmp.lt.s32.totalorder %s31, 3
      %p418 = pnand %p416, %p417
      %p419 = pneg %p418
      // Predicated region
      $region53: #{tpu_custom_call.1} parent=5 // pred_check
        _
      $region54: #{tpu_custom_call.1} parent=5 // pred_check_branch
        %421 = sbr.rel (%p418) target = $region56
      $region55: #{tpu_custom_call.1} parent=5 // pred_region
        %s422 = ssub.s32 %s31, 1
        %s423 = sand.u32 %s44, 1
        %s424 = scalar_lea.sflag [#allocation3], %s423
        %s425 = sand.u32 %s44, 1
        %s426 = smul.addr %s425, 4
        %s427 = scalar_lea.vmem [#allocation2], %s426
        // Predicated region
        $region57: #{tpu_custom_call.1} parent=55 // pred_check
          %p428 = pneg %p57
        $region58: #{tpu_custom_call.1} parent=55 // pred_check_branch
          %430 = sbr.rel (%p428) target = $region60
        $region59: #{tpu_custom_call.1} parent=55 // pred_region
          %431 = dma.done %s424, 64
        $region60: #{tpu_custom_call.1} parent=55 // pred_fallthru
          _
        %s432 = sand.u32 %s36, 1
        %s433 = scalar_lea.sflag [#allocation6], %s432
        %s434 = sand.u32 %s70, 1
        %s435 = smul.addr %s434, 4
        %s436 = scalar_lea.vmem [#allocation5], %s435
        // Predicated region
        $region61: #{tpu_custom_call.1} parent=55 // pred_check
          %p437 = pneg %p83
        $region62: #{tpu_custom_call.1} parent=55 // pred_check_branch
          %439 = sbr.rel (%p437) target = $region64
        $region63: #{tpu_custom_call.1} parent=55 // pred_region
          %440 = dma.done %s433, 64
        $region64: #{tpu_custom_call.1} parent=55 // pred_fallthru
          _
        %s441 = sand.u32 %s36, 1
        %s442 = scalar_lea.sflag [#allocation6], %s441
        %s443 = sand.u32 %s96, 1
        %s444 = smul.addr %s443, 4
        %s445 = scalar_lea.vmem [#allocation7], %s444
        // Predicated region
        $region65: #{tpu_custom_call.1} parent=55 // pred_check
          %p446 = pneg %p109
        $region66: #{tpu_custom_call.1} parent=55 // pred_check_branch
          %448 = sbr.rel (%p446) target = $region68
        $region67: #{tpu_custom_call.1} parent=55 // pred_region
          %449 = dma.done %s442, 64
        $region68: #{tpu_custom_call.1} parent=55 // pred_fallthru
          _
        // Predicated region
        $region69: #{tpu_custom_call.1} parent=55 // pred_check
          %p450 = pneg %p130
        $region70: #{tpu_custom_call.1} parent=55 // pred_check_branch
          %452 = sbr.rel (%p450) target = $region72
        $region71: #{tpu_custom_call.1} parent=55 // pred_region
          %453 = dma.done [#allocation9], 128
        $region72: #{tpu_custom_call.1} parent=55 // pred_fallthru
          _
        // Predicated region
        $region73: #{tpu_custom_call.1} parent=55 // pred_check
          %p454 = pneg %p151
        $region74: #{tpu_custom_call.1} parent=55 // pred_check_branch
          %456 = sbr.rel (%p454) target = $region76
        $region75: #{tpu_custom_call.1} parent=55 // pred_region
          %457 = dma.done [#allocation9], 256
        $region76: #{tpu_custom_call.1} parent=55 // pred_fallthru
          _
        // Predicated region
        $region77: #{tpu_custom_call.1} parent=55 // pred_check
          %p458 = pneg %p193
        $region78: #{tpu_custom_call.1} parent=55 // pred_check_branch
          %460 = sbr.rel (%p458) target = $region80
        $region79: #{tpu_custom_call.1} parent=55 // pred_region
          %461 = dma.done [#allocation12], 256
        $region80: #{tpu_custom_call.1} parent=55 // pred_fallthru
          _
        // Predicated region
        $region81: #{tpu_custom_call.1} parent=55 // pred_check
          %p462 = pneg %p214
        $region82: #{tpu_custom_call.1} parent=55 // pred_check_branch
          %464 = sbr.rel (%p462) target = $region84
        $region83: #{tpu_custom_call.1} parent=55 // pred_region
          %465 = dma.done [#allocation12], 256
        $region84: #{tpu_custom_call.1} parent=55 // pred_fallthru
          _
        %s466 = sand.u32 %s44, 1
        %s467 = scalar_lea.sflag [#allocation3], %s466
        %s468 = sand.u32 %s44, 1
        %s469 = smul.addr %s468, 4
        %s470 = scalar_lea.vmem [#allocation2], %s469
        %p471 = pneg %p57
        %p472 = pneg %p54
        %s473 = sand.u32 %s36, 1
        %s474 = scalar_lea.sflag [#allocation6], %s473
        %s475 = sand.u32 %s70, 1
        %s476 = smul.addr %s475, 4
        %s477 = scalar_lea.vmem [#allocation5], %s476
        %p478 = pneg %p83
        %p479 = pneg %p80
        %s480 = sand.u32 %s36, 1
        %s481 = scalar_lea.sflag [#allocation6], %s480
        %s482 = sand.u32 %s96, 1
        %s483 = smul.addr %s482, 4
        %s484 = scalar_lea.vmem [#allocation7], %s483
        %p485 = pneg %p109
        %p486 = pneg %p106
        %p487 = pneg %p130
        %p488 = pneg %p127
        %p489 = pneg %p151
        %p490 = pneg %p148
        %p491 = pneg %p172
        %p492 = pneg %p169
        %p493 = pneg %p193
        %p494 = pneg %p190
        %p495 = pneg %p214
        %p496 = pneg %p211
        %p497 = pneg %p235
        %p498 = pneg %p232
        %p499 = pneg %p261
        %p500 = pneg %p258
        %s501 = sand.u32 %s248, 1
        %s502 = scalar_lea.sflag [#allocation4], %s501
        %s503 = sand.u32 %s248, 1
        %s504 = smul.addr %s503, 8
        %s505 = scalar_lea.vmem [#allocation14], %s504
        %p506 = pneg %p287
        %p507 = pneg %p284
        %s508 = sand.u32 %s274, 1
        %s509 = scalar_lea.sflag [#allocation16], %s508
        %s510 = sand.u32 %s274, 1
        %s511 = smul.addr %s510, 8
        %s512 = scalar_lea.vmem [#allocation15], %s511
        %v514 = vld [vmem:[%s8] sm:$0x1]
        %v515 = vld [vmem:[%s8 + $0x1] sm:$0x1]
        %v516 = vld [vmem:[%s8 + $0x2] sm:$0x1]
        %v517 = vld [vmem:[%s8 + $0x3] sm:$0x1]
        %v518 = vld [vmem:[%s427] sm:$0xf]
        %v519 = vld [vmem:[#allocation10] sm:$0xf]
        %v520 = vld [vmem:[#allocation10 + $0x4] sm:$0xf]
        %v521 = vld [vmem:[#allocation10 + $0x8] sm:$0xf]
        %v522 = vld [vmem:[#allocation10 + $0xc] sm:$0xf]
        %v523 = vlaneseq
        %v524 = vshrl.u32 %v523, 7
        %v525 = vsub.s32 0, %v524
        %v526 = vrot.slane %v514, %v525
        %v531 = vunpack.c.l.b16 %v519
        %v532 = vunpack.c.l.b16 %v520
        %v533 = vunpack.c.l.b16 %v521
        %v534 = vunpack.c.l.b16 %v522
        %v535 = vpack.c.b16 %v532, %v531
        %v536 = vpack.c.b16 %v534, %v533
        %vm539 = vcmask 261120
        %v541 = vsel %vm539, %v518, 0
        %543 = vmatprep.subr.bf16.mxu0 0
        %544 = vmatpush1.bf16.msra.mxu0 %v535
        %545 = vmatprep.subr.bf16.mxu0 0
        %546 = vmatpush1.bf16.msra.mxu0 %v536
        %547 = vmatprep.subr.bf16.mxu0 0
        %548 = vmatpush1.bf16.msra.mxu0 0
        %549 = vmatprep.subr.bf16.mxu0 0
        %550 = vmatpush1.bf16.msra.mxu0 0
        %551 = vmatprep.subr.bf16.mxu0 0
        %552 = vmatpush1.bf16.msra.mxu0 0
        %553 = vmatprep.subr.bf16.mxu0 0
        %554 = vmatpush1.bf16.msra.mxu0 0
        %555 = vmatprep.subr.bf16.mxu0 0
        %556 = vmatpush1.bf16.msra.mxu0 0
        %557 = vmatprep.subr.bf16.mxu0 0
        %558 = vmatpush1.bf16.msra.mxu0 0
        %559 = vmatprep.subr.bf16.mxu0 0
        %560 = vmatpush1.bf16.msra.mxu0 0
        %561 = vmatprep.subr.bf16.mxu0 0
        %562 = vmatpush1.bf16.msra.mxu0 0
        %563 = vmatprep.subr.bf16.mxu0 0
        %564 = vmatpush1.bf16.msra.mxu0 0
        %565 = vmatprep.subr.bf16.mxu0 0
        %566 = vmatpush1.bf16.msra.mxu0 0
        %567 = vmatprep.subr.bf16.mxu0 0
        %568 = vmatpush1.bf16.msra.mxu0 0
        %569 = vmatprep.subr.bf16.mxu0 0
        %570 = vmatpush1.bf16.msra.mxu0 0
        %571 = vmatprep.subr.bf16.mxu0 0
        %572 = vmatpush1.bf16.msra.mxu0 0
        %573 = vmatprep.subr.bf16.mxu0 0
        %574 = vmatpush1.bf16.msra.mxu0 0
        %575 = vmatprep.mubr.bf16.mxu0 0
        %576 = vmatmul.mubr.bf16.gmra.mrb[0].mxu0 %v541
        %v577 = vpop.f32.mrb[0].mxu0
        %v578 = vadd.f32 %v526, %v577
        %v579 = vpop.f32.mrb[0].mxu0
        %v580 = vpop.f32.mrb[0].mxu0
        %v581 = vpop.f32.mrb[0].mxu0
        %582 = vdwg.mxu0
        %v583 = vld [vmem:[%s436] sm:$0xf]
        %v584 = vld [vmem:[%s5] sm:$0xf]
        %v585 = vld [vmem:[%s5 + $0x4] sm:$0xf]
        %v586 = vld [vmem:[%s5 + $0x8] sm:$0xf]
        %v587 = vld [vmem:[%s5 + $0xc] sm:$0xf]
        %v588 = vlaneseq
        %v589 = vshrl.u32 %v588, 7
        %v590 = vsub.s32 0, %v589
        %v591 = vrot.slane %v515, %v590
        %v596 = vunpack.c.l.b16 %v584
        %v597 = vunpack.c.l.b16 %v585
        %v598 = vunpack.c.l.b16 %v586
        %v599 = vunpack.c.l.b16 %v587
        %v600 = vpack.c.b16 %v597, %v596
        %v601 = vpack.c.b16 %v599, %v598
        %v605 = vsel %vm539, %v583, 0
        %607 = vmatprep.subr.bf16.mxu0 0
        %608 = vmatpush1.bf16.msra.mxu0 %v600
        %609 = vmatprep.subr.bf16.mxu0 0
        %610 = vmatpush1.bf16.msra.mxu0 %v601
        %611 = vmatprep.subr.bf16.mxu0 0
        %612 = vmatpush1.bf16.msra.mxu0 0
        %613 = vmatprep.subr.bf16.mxu0 0
        %614 = vmatpush1.bf16.msra.mxu0 0
        %615 = vmatprep.subr.bf16.mxu0 0
        %616 = vmatpush1.bf16.msra.mxu0 0
        %617 = vmatprep.subr.bf16.mxu0 0
        %618 = vmatpush1.bf16.msra.mxu0 0
        %619 = vmatprep.subr.bf16.mxu0 0
        %620 = vmatpush1.bf16.msra.mxu0 0
        %621 = vmatprep.subr.bf16.mxu0 0
        %622 = vmatpush1.bf16.msra.mxu0 0
        %623 = vmatprep.subr.bf16.mxu0 0
        %624 = vmatpush1.bf16.msra.mxu0 0
        %625 = vmatprep.subr.bf16.mxu0 0
        %626 = vmatpush1.bf16.msra.mxu0 0
        %627 = vmatprep.subr.bf16.mxu0 0
        %628 = vmatpush1.bf16.msra.mxu0 0
        %629 = vmatprep.subr.bf16.mxu0 0
        %630 = vmatpush1.bf16.msra.mxu0 0
        %631 = vmatprep.subr.bf16.mxu0 0
        %632 = vmatpush1.bf16.msra.mxu0 0
        %633 = vmatprep.subr.bf16.mxu0 0
        %634 = vmatpush1.bf16.msra.mxu0 0
        %635 = vmatprep.subr.bf16.mxu0 0
        %636 = vmatpush1.bf16.msra.mxu0 0
        %637 = vmatprep.subr.bf16.mxu0 0
        %638 = vmatpush1.bf16.msra.mxu0 0
        %639 = vmatprep.mubr.bf16.mxu0 0
        %640 = vmatmul.mubr.bf16.gmra.mrb[0].mxu0 %v605
        %v641 = vpop.f32.mrb[0].mxu0
        %v642 = vadd.f32 %v591, %v641
        %v643 = vpop.f32.mrb[0].mxu0
        %v644 = vpop.f32.mrb[0].mxu0
        %v645 = vpop.f32.mrb[0].mxu0
        %646 = vdwg.mxu0
        %v647 = vld [vmem:[%s445] sm:$0xf]
        %v648 = vld [vmem:[#allocation11] sm:$0xf]
        %v649 = vld [vmem:[#allocation11 + $0x4] sm:$0xf]
        %v650 = vld [vmem:[#allocation11 + $0x8] sm:$0xf]
        %v651 = vld [vmem:[#allocation11 + $0xc] sm:$0xf]
        %v652 = vlaneseq
        %v653 = vshrl.u32 %v652, 7
        %v654 = vsub.s32 0, %v653
        %v655 = vrot.slane %v516, %v654
        %v660 = vunpack.c.l.b16 %v648
        %v661 = vunpack.c.l.b16 %v649
        %v662 = vunpack.c.l.b16 %v650
        %v663 = vunpack.c.l.b16 %v651
        %v664 = vpack.c.b16 %v661, %v660
        %v665 = vpack.c.b16 %v663, %v662
        %v669 = vsel %vm539, %v647, 0
        %671 = vmatprep.subr.bf16.mxu0 0
        %672 = vmatpush1.bf16.msra.mxu0 %v664
        %673 = vmatprep.subr.bf16.mxu0 0
        %674 = vmatpush1.bf16.msra.mxu0 %v665
        %675 = vmatprep.subr.bf16.mxu0 0
        %676 = vmatpush1.bf16.msra.mxu0 0
        %677 = vmatprep.subr.bf16.mxu0 0
        %678 = vmatpush1.bf16.msra.mxu0 0
        %679 = vmatprep.subr.bf16.mxu0 0
        %680 = vmatpush1.bf16.msra.mxu0 0
        %681 = vmatprep.subr.bf16.mxu0 0
        %682 = vmatpush1.bf16.msra.mxu0 0
        %683 = vmatprep.subr.bf16.mxu0 0
        %684 = vmatpush1.bf16.msra.mxu0 0
        %685 = vmatprep.subr.bf16.mxu0 0
        %686 = vmatpush1.bf16.msra.mxu0 0
        %687 = vmatprep.subr.bf16.mxu0 0
        %688 = vmatpush1.bf16.msra.mxu0 0
        %689 = vmatprep.subr.bf16.mxu0 0
        %690 = vmatpush1.bf16.msra.mxu0 0
        %691 = vmatprep.subr.bf16.mxu0 0
        %692 = vmatpush1.bf16.msra.mxu0 0
        %693 = vmatprep.subr.bf16.mxu0 0
        %694 = vmatpush1.bf16.msra.mxu0 0
        %695 = vmatprep.subr.bf16.mxu0 0
        %696 = vmatpush1.bf16.msra.mxu0 0
        %697 = vmatprep.subr.bf16.mxu0 0
        %698 = vmatpush1.bf16.msra.mxu0 0
        %699 = vmatprep.subr.bf16.mxu0 0
        %700 = vmatpush1.bf16.msra.mxu0 0
        %701 = vmatprep.subr.bf16.mxu0 0
        %702 = vmatpush1.bf16.msra.mxu0 0
        %703 = vmatprep.mubr.bf16.mxu0 0
        %704 = vmatmul.mubr.bf16.gmra.mrb[0].mxu0 %v669
        %v705 = vpop.f32.mrb[0].mxu0
        %v706 = vadd.f32 %v655, %v705
        %v707 = vpop.f32.mrb[0].mxu0
        %v708 = vpop.f32.mrb[0].mxu0
        %v709 = vpop.f32.mrb[0].mxu0
        %710 = vdwg.mxu0
        %v711 = vld [vmem:[#allocation8] sm:$0xff]
        %v712 = vld [vmem:[#allocation13] sm:$0xf]
        %v713 = vld [vmem:[#allocation13 + $0x4] sm:$0xf]
        %v714 = vld [vmem:[#allocation13 + $0x8] sm:$0xf]
        %v715 = vld [vmem:[#allocation13 + $0xc] sm:$0xf]
        %v716 = vpack.c.bf16 %v578, %v578
        %v717 = vpack.c.bf16 %v642, %v642
        %v719 = vsel %vm539, %v716, 0
        %v722 = vsel %vm539, %v717, 0
        %724 = vmatprep.subr.bf16.mxu0 0
        %725 = vmatpush1.bf16.xpose.msra.mxu0 %v722
        %726 = vmatprep.subr.bf16.mxu0 0
        %727 = vmatpush1.bf16.xpose.msra.mxu0 0
        %728 = vmatprep.subr.bf16.mxu0 0
        %729 = vmatpush1.bf16.xpose.msra.mxu0 0
        %730 = vmatprep.subr.bf16.mxu0 0
        %731 = vmatpush1.bf16.xpose.msra.mxu0 0
        %732 = vmatprep.subr.bf16.mxu0 0
        %733 = vmatpush1.bf16.xpose.msra.mxu0 0
        %734 = vmatprep.subr.bf16.mxu0 0
        %735 = vmatpush1.bf16.xpose.msra.mxu0 0
        %736 = vmatprep.subr.bf16.mxu0 0
        %737 = vmatpush1.bf16.xpose.msra.mxu0 0
        %738 = vmatprep.subr.bf16.mxu0 0
        %739 = vmatpush1.bf16.xpose.msra.mxu0 0
        %740 = vmatprep.subr.bf16.mxu0 0
        %741 = vmatpush1.bf16.xpose.msra.mxu0 0
        %742 = vmatprep.subr.bf16.mxu0 0
        %743 = vmatpush1.bf16.xpose.msra.mxu0 0
        %744 = vmatprep.subr.bf16.mxu0 0
        %745 = vmatpush1.bf16.xpose.msra.mxu0 0
        %746 = vmatprep.subr.bf16.mxu0 0
        %747 = vmatpush1.bf16.xpose.msra.mxu0 0
        %748 = vmatprep.subr.bf16.mxu0 0
        %749 = vmatpush1.bf16.xpose.msra.mxu0 0
        %750 = vmatprep.subr.bf16.mxu0 0
        %751 = vmatpush1.bf16.xpose.msra.mxu0 0
        %752 = vmatprep.subr.bf16.mxu0 0
        %753 = vmatpush1.bf16.xpose.msra.mxu0 0
        %754 = vmatprep.subr.bf16.mxu0 0
        %755 = vmatpush1.bf16.xpose.msra.mxu0 0
        %756 = vmatprep.mubr.bf16.mxu0 0
        %757 = vmatmul.mubr.bf16.gmra.mrb[0].mxu0 %v719
        %v758 = vpop.f32.mrb[0].mxu0
        %v759 = vadd.f32 %v711, %v758
        %v760 = vpop.f32.mrb[0].mxu0
        %v761 = vpop.f32.mrb[0].mxu0
        %v762 = vpop.f32.mrb[0].mxu0
        %763 = vdwg.mxu0
        %vm764 = vcmask 64512
        %v765 = vsel %vm764, %v759, -inf
        %766 = vmax.xlane.f32.xlu0 %v765
        %v767 = vpop.xlane.xlu0 %766
        %v768 = vsub.f32 %v759, %v767
        %v769 = vmul.f32 %v768, 1.442695
        %v770 = vpow.pop %v769
        %v771 = vsel %vm764, %v770, 0.0
        %772 = vadd.xlane.f32.xlu0 %v771
        %v773 = vpop.xlane.xlu0 %772
        %v774 = vrcp.pop %v773
        %v775 = vmul.f32 1.0, %v774
        %v776 = vmul.f32 %v770, %v775
        %777 = vst.msk [vmem:[%s512] sm:$0xff] %vm764, %v776
        %v778 = vpack.c.bf16 %v776, %v776
        %v779 = vpack.c.bf16 %v706, %v706
        %v781 = vsel %vm764, %v778, 0
        %vm783 = vcmask 1043456
        %v785 = vsel %vm783, %v779, 0
        %787 = vmatprep.subr.bf16.mxu0 0
        %788 = vmatpush1.bf16.msra.mxu0 %v785
        %789 = vmatprep.subr.bf16.mxu0 0
        %790 = vmatpush1.bf16.msra.mxu0 0
        %791 = vmatprep.subr.bf16.mxu0 0
        %792 = vmatpush1.bf16.msra.mxu0 0
        %793 = vmatprep.subr.bf16.mxu0 0
        %794 = vmatpush1.bf16.msra.mxu0 0
        %795 = vmatprep.subr.bf16.mxu0 0
        %796 = vmatpush1.bf16.msra.mxu0 0
        %797 = vmatprep.subr.bf16.mxu0 0
        %798 = vmatpush1.bf16.msra.mxu0 0
        %799 = vmatprep.subr.bf16.mxu0 0
        %800 = vmatpush1.bf16.msra.mxu0 0
        %801 = vmatprep.subr.bf16.mxu0 0
        %802 = vmatpush1.bf16.msra.mxu0 0
        %803 = vmatprep.subr.bf16.mxu0 0
        %804 = vmatpush1.bf16.msra.mxu0 0
        %805 = vmatprep.subr.bf16.mxu0 0
        %806 = vmatpush1.bf16.msra.mxu0 0
        %807 = vmatprep.subr.bf16.mxu0 0
        %808 = vmatpush1.bf16.msra.mxu0 0
        %809 = vmatprep.subr.bf16.mxu0 0
        %810 = vmatpush1.bf16.msra.mxu0 0
        %811 = vmatprep.subr.bf16.mxu0 0
        %812 = vmatpush1.bf16.msra.mxu0 0
        %813 = vmatprep.subr.bf16.mxu0 0
        %814 = vmatpush1.bf16.msra.mxu0 0
        %815 = vmatprep.subr.bf16.mxu0 0
        %816 = vmatpush1.bf16.msra.mxu0 0
        %817 = vmatprep.subr.bf16.mxu0 0
        %818 = vmatpush1.bf16.msra.mxu0 0
        %819 = vmatprep.mubr.bf16.mxu0 0
        %820 = vmatmul.mubr.bf16.gmra.mrb[0].mxu0 %v781
        %v821 = vpop.f32.mrb[0].mxu0
        %v822 = vadd.f32 0.0, %v821
        %v823 = vpop.f32.mrb[0].mxu0
        %v824 = vpop.f32.mrb[0].mxu0
        %v825 = vpop.f32.mrb[0].mxu0
        %826 = vdwg.mxu0
        %v827 = vpack.c.bf16 %v822, %v822
        %v828 = vlaneseq
        %v829 = vshrl.u32 %v828, 7
        %v830 = vsub.s32 0, %v829
        %v831 = vrot.slane %v517, %v830
        %v836 = vunpack.c.l.b16 %v712
        %v837 = vunpack.c.l.b16 %v713
        %v838 = vunpack.c.l.b16 %v714
        %v839 = vunpack.c.l.b16 %v715
        %v840 = vpack.c.b16 %v837, %v836
        %v841 = vpack.c.b16 %v839, %v838
        %v845 = vsel %vm539, %v827, 0
        %847 = vmatprep.subr.bf16.mxu0 0
        %848 = vmatpush1.bf16.msra.mxu0 %v840
        %849 = vmatprep.subr.bf16.mxu0 0
        %850 = vmatpush1.bf16.msra.mxu0 %v841
        %851 = vmatprep.subr.bf16.mxu0 0
        %852 = vmatpush1.bf16.msra.mxu0 0
        %853 = vmatprep.subr.bf16.mxu0 0
        %854 = vmatpush1.bf16.msra.mxu0 0
        %855 = vmatprep.subr.bf16.mxu0 0
        %856 = vmatpush1.bf16.msra.mxu0 0
        %857 = vmatprep.subr.bf16.mxu0 0
        %858 = vmatpush1.bf16.msra.mxu0 0
        %859 = vmatprep.subr.bf16.mxu0 0
        %860 = vmatpush1.bf16.msra.mxu0 0
        %861 = vmatprep.subr.bf16.mxu0 0
        %862 = vmatpush1.bf16.msra.mxu0 0
        %863 = vmatprep.subr.bf16.mxu0 0
        %864 = vmatpush1.bf16.msra.mxu0 0
        %865 = vmatprep.subr.bf16.mxu0 0
        %866 = vmatpush1.bf16.msra.mxu0 0
        %867 = vmatprep.subr.bf16.mxu0 0
        %868 = vmatpush1.bf16.msra.mxu0 0
        %869 = vmatprep.subr.bf16.mxu0 0
        %870 = vmatpush1.bf16.msra.mxu0 0
        %871 = vmatprep.subr.bf16.mxu0 0
        %872 = vmatpush1.bf16.msra.mxu0 0
        %873 = vmatprep.subr.bf16.mxu0 0
        %874 = vmatpush1.bf16.msra.mxu0 0
        %875 = vmatprep.subr.bf16.mxu0 0
        %876 = vmatpush1.bf16.msra.mxu0 0
        %877 = vmatprep.subr.bf16.mxu0 0
        %878 = vmatpush1.bf16.msra.mxu0 0
        %879 = vmatprep.mubr.bf16.mxu0 0
        %880 = vmatmul.mubr.bf16.gmra.mrb[0].mxu0 %v845
        %v881 = vpop.f32.mrb[0].mxu0
        %v882 = vadd.f32 %v831, %v881
        %v883 = vpop.f32.mrb[0].mxu0
        %v884 = vpop.f32.mrb[0].mxu0
        %v885 = vpop.f32.mrb[0].mxu0
        %886 = vdwg.mxu0
        %887 = vst.msk [vmem:[%s505] sm:$0xff] %vm539, %v882
        %s888 = sand.u32 %s248, 1
        %s889 = scalar_lea.sflag [#allocation4], %s888
        %s890 = sand.u32 %s248, 1
        %s891 = smul.addr %s890, 8
        %s892 = scalar_lea.vmem [#allocation14], %s891
        %s893 = sand.u32 %s274, 1
        %s894 = scalar_lea.sflag [#allocation16], %s893
        %s895 = sand.u32 %s274, 1
        %s896 = smul.addr %s895, 8
        %s897 = scalar_lea.vmem [#allocation15], %s896
        // Predicated region
        $region85: #{tpu_custom_call.1} parent=55 // pred_check
          %p898 = pneg %p258
        $region86: #{tpu_custom_call.1} parent=55 // pred_check_branch
          %900 = sbr.rel (%p898) target = $region88
        $region87: #{tpu_custom_call.1} parent=55 // pred_region
          %s902 = ssub.s32 128, 128
          %903 = vsyncadd %s889, %s902
          %s904 = smul.addr %s36, 128
          %s905 = scalar_lea.hbm %s9, %s904
          %s907 = sshll.u32 %s892, 4
          %s908 = int_to_ptr.vmem [resolvable:$true] %s907
          %910 = dma.vmem_to_hbm [thread:$0]  %s908, 128, %s905, %s889
        $region88: #{tpu_custom_call.1} parent=55 // pred_fallthru
          _
        // Predicated region
        $region89: #{tpu_custom_call.1} parent=55 // pred_check
          %p911 = pneg %p284
        $region90: #{tpu_custom_call.1} parent=55 // pred_check_branch
          %913 = sbr.rel (%p911) target = $region92
        $region91: #{tpu_custom_call.1} parent=55 // pred_region
          %s915 = ssub.s32 128, 128
          %916 = vsyncadd %s894, %s915
          %s917 = smul.addr %s36, 128
          %s918 = scalar_lea.hbm %s10, %s917
          %s920 = sshll.u32 %s897, 4
          %s921 = int_to_ptr.vmem [resolvable:$true] %s920
          %923 = dma.vmem_to_hbm [thread:$0]  %s921, 128, %s918, %s894
        $region92: #{tpu_custom_call.1} parent=55 // pred_fallthru
          _
      $region56: #{tpu_custom_call.1} parent=5 // pred_fallthru
        _
      %p924 = scmp.le.s32.totalorder 2, %s31
      // Predicated region
      $region93: #{tpu_custom_call.1} parent=5 // pred_check
        %p925 = pneg %p924
      $region94: #{tpu_custom_call.1} parent=5 // pred_check_branch
        %927 = sbr.rel (%p925) target = $region96
      $region95: #{tpu_custom_call.1} parent=5 // pred_region
        %s928 = ssub.s32 %s31, 2
        // Predicated region
        $region97: #{tpu_custom_call.1} parent=95 // pred_check
          %p929 = pneg %p264
        $region98: #{tpu_custom_call.1} parent=95 // pred_check_branch
          %931 = sbr.rel (%p929) target = $region100
        $region99: #{tpu_custom_call.1} parent=95 // pred_region
          %s932 = sand.u32 %s249, 1
          %s933 = scalar_lea.sflag [#allocation4], %s932
          %s934 = sand.u32 %s249, 1
          %s935 = smul.addr %s934, 8
          %s936 = scalar_lea.vmem [#allocation14], %s935
          %937 = dma.done %s933, 128
        $region100: #{tpu_custom_call.1} parent=95 // pred_fallthru
          _
        // Predicated region
        $region101: #{tpu_custom_call.1} parent=95 // pred_check
          %p938 = pneg %p290
        $region102: #{tpu_custom_call.1} parent=95 // pred_check_branch
          %940 = sbr.rel (%p938) target = $region104
        $region103: #{tpu_custom_call.1} parent=95 // pred_region
          %s941 = sand.u32 %s275, 1
          %s942 = scalar_lea.sflag [#allocation16], %s941
          %s943 = sand.u32 %s275, 1
          %s944 = smul.addr %s943, 8
          %s945 = scalar_lea.vmem [#allocation15], %s944
          %946 = dma.done %s942, 128
        $region104: #{tpu_custom_call.1} parent=95 // pred_fallthru
          _
      $region96: #{tpu_custom_call.1} parent=5 // pred_fallthru
        _
    $region6: #{tpu_custom_call.1} parent=1 // loop_footer
      %s35 = sadd.s32 1, %s31
    $region7: #{tpu_custom_call.1} parent=1 // loop_footer_branch
      %30 = sbr.rel target = $region3
    $region8: #{tpu_custom_call.1} parent=1 // loop_exit
      _
    %947 = vsyncpa [#allocation3], 1
    %s948 = scalar_lea.sflag [#allocation3], 1
    %949 = vsyncpa %s948, 1
    %950 = vsyncpa [#allocation6], 1
    %s951 = scalar_lea.sflag [#allocation6], 1
    %952 = vsyncpa %s951, 1
    %953 = vsyncpa [#allocation9], 1
    %954 = vsyncpa [#allocation12], 1
    %955 = vsyncpa [#allocation4], 1
    %s956 = scalar_lea.sflag [#allocation4], 1
    %957 = vsyncpa %s956, 1
    %958 = vsyncpa [#allocation16], 1
    %s959 = scalar_lea.sflag [#allocation16], 1
    %960 = vsyncpa %s959, 1

</llo_original>
